<compile_context>
chip_gen: v7x
topology: tpu7x:2x2x1
jax: 0.10.0
libtpu: 0.0.40
codegen_flags: <defaults>
</compile_context>

<pallas_src>
import jax
import jax.numpy as jnp
from jax.experimental import pallas as pl
from jax.experimental.pallas import tpu as pltpu

# DARTS-like primitive set; fc2 hard-codes 10 input channels in the PyTorch
# module, so len(PRIMITIVES) must be 10 for the forward pass to be valid.
PRIMITIVES = [
    "none", "max_pool_3x3", "avg_pool_3x3", "skip_connect",
    "sep_conv_3x3", "sep_conv_5x5", "dil_conv_3x3", "dil_conv_5x5",
    "conv_7x1_1x7", "sep_conv_7x7",
]
NUM_PRIMITIVES = len(PRIMITIVES)  # 10


# ---------------------------------------------------------------------------
# Kernel 1: per-row (b, c) spatial sum + max over HW.
# ---------------------------------------------------------------------------
def _make_reduce_kernel(hw_total, spatial_tile, lane_width, needs_mask,
                        use_mxu_sum):
    n_groups = spatial_tile // lane_width

    def kernel(x_ref, sum_ref, max_ref, *scratch):
        if use_mxu_sum:
            (max_acc,) = scratch
            psum_acc = None
        else:
            max_acc, psum_acc = scratch

        s = pl.program_id(1)
        n_s = pl.num_programs(1)
        dt = x_ref.dtype

        @pl.when(s == 0)
        def _init():
            max_acc[...] = jnp.full_like(max_acc, -jnp.inf)
            if use_mxu_sum:
                sum_ref[...] = jnp.zeros_like(sum_ref)
            else:
                psum_acc[...] = jnp.zeros_like(psum_acc)

        def steady_step():
            if use_mxu_sum:
                # Spatial sum on the MXU: native-dtype in, f32 accumulate.
                ones_col = jnp.ones((spatial_tile, 1), dtype=dt)
                sum_ref[...] += jax.lax.dot_general(
                    x_ref[...], ones_col,
                    dimension_numbers=(((1,), (0,)), ((), ())),
                    preferred_element_type=jnp.float32)
            # Running max (and f32 partial sums for the f32 path) as per-lane-
            # group elementwise ops: no per-step cross-lane (XLU) reduction.
            m = max_acc[...]
            p = None if use_mxu_sum else psum_acc[...]
            for g in range(n_groups):
                xg = x_ref[:, g * lane_width:(g + 1) * lane_width]
                m = jnp.maximum(m, xg)
                if not use_mxu_sum:
                    p = p + xg.astype(jnp.float32)
            max_acc[...] = m
            if not use_mxu_sum:
                psum_acc[...] = p

        def tail_step():
            # Last spatial chunk only: padded columns are masked (sum with 0,
            # max with -inf).  The data itself is masked so NaN/Inf garbage in
            # the padding cannot poison valid rows.
            base = s * spatial_tile
            neg_inf = jnp.array(-jnp.inf, dtype=dt)
            zero = jnp.zeros((), dtype=dt)
            m = max_acc[...]
            if use_mxu_sum:
                p = jnp.zeros((x_ref.shape[0], lane_width), jnp.float32)
            else:
                p = psum_acc[...]
            for g in range(n_groups):
                xg = x_ref[:, g * lane_width:(g + 1) * lane_width]
                lane = jax.lax.broadcasted_iota(jnp.int32, xg.shape, 1)
                valid = (base + g * lane_width + lane) < hw_total
                m = jnp.maximum(m, jnp.where(valid, xg, neg_inf))
                p = p + jnp.where(valid, xg, zero).astype(jnp.float32)
            max_acc[...] = m
            if use_mxu_sum:
                sum_ref[...] += jnp.sum(p, axis=-1, keepdims=True)
            else:
                psum_acc[...] = p

        if needs_mask:
            # Mask only on the final chunk; steady-state chunks stay unmasked.
            @pl.when(s < n_s - 1)
            def _steady():
                steady_step()

            @pl.when(s == n_s - 1)
            def _tail():
                tail_step()
        else:
            steady_step()

        @pl.when(s == n_s - 1)
        def _finalize():
            if not use_mxu_sum:
                sum_ref[...] = jnp.sum(psum_acc[...], axis=-1, keepdims=True)
            max_ref[...] = jnp.max(max_acc[...].astype(jnp.float32),
                                   axis=-1, keepdims=True)

    return kernel


# ---------------------------------------------------------------------------
# Kernel 2: tiny epilogue -- fc1 on [avg, max], gram matmul, ReLU, fc2, sigmoid.
# ---------------------------------------------------------------------------
def _make_epilogue_kernel(inv_hw):
    def kernel(sum_ref, max_ref, gram_ref, w1a_ref, w1b_ref, w2_ref, o_ref):
        avg = sum_ref[...] * inv_hw                                 # (B, C) f32
        mx = max_ref[...]                                           # (B, C) f32
        # fc1 (1x1 conv, no bias) on concat([avg, mx]) via split weights.
        y1 = (jnp.dot(avg, w1a_ref[...], preferred_element_type=jnp.float32)
              + jnp.dot(mx, w1b_ref[...], preferred_element_type=jnp.float32))
        # gram = W^T W is symmetric, so y1 @ gram == (gram @ y1^T)^T.
        z = jnp.maximum(
            jnp.dot(y1, gram_ref[...], preferred_element_type=jnp.float32), 0.0)
        out = jnp.dot(z, w2_ref[...], preferred_element_type=jnp.float32)
        o_ref[...] = jax.nn.sigmoid(out).astype(o_ref.dtype)

    return kernel


# ---------------------------------------------------------------------------
# Wrapper.
# ---------------------------------------------------------------------------
def channel_attention(x_nchw, weights_all, fc1_weight, fc2_weight,
                      *, spatial_tile_override=None):
    """ChannelAttention forward.

    x_nchw     : (B, C, H, W)   f32 or bf16
    weights_all: (K, P)         architecture weights
    fc1_weight : (P, 2C, 1, 1)  PyTorch Conv2d weight layout
    fc2_weight : (C, P, 1, 1)
    returns    : (B, C, 1, 1)   same dtype as x_nchw
    """
    B, C, H, W = x_nchw.shape
    P = fc1_weight.shape[0]
    HW = H * W
    R = B * C

    # Rows = (b, c) pairs; native dtype stays in HBM (no f32 up-cast in HBM).
    x2 = x_nchw.reshape(R, HW)
    itemsize = x2.dtype.itemsize
    use_mxu_sum = x2.dtype != jnp.float32   # f32 keeps exact VPU accumulation

    # Small weights, prepared once on the host side of the call (hoisted gram).
    w1 = fc1_weight[:, :, 0, 0].astype(jnp.float32)                   # (P, 2C)
    w1a_t = jnp.transpose(w1[:, :C])                                  # (C, P)
    w1b_t = jnp.transpose(w1[:, C:])                                  # (C, P)
    w2_t = jnp.transpose(fc2_weight[:, :, 0, 0]).astype(jnp.float32)  # (P, C)
    wall = weights_all.astype(jnp.float32)
    gram = wall.T @ wall                                              # (P, P)

    # --- generation-aware VMEM budget & tile selection -----------------------
    try:
        vmem_cap = int(pltpu.get_tpu_info().vmem_capacity_bytes)
    except Exception:
        vmem_cap = 64 * 1024 * 1024          # conservative (v7x-sized) fallback
    # v5e/v6e (128 MiB physical) -> 96 MiB limit; v7x (64 MiB) -> 48 MiB.
    vmem_limit = int(min(vmem_cap * 3 // 4, 96 * 1024 * 1024))
    # Double-buffered x tiles get half the limit (headroom for scratch/temps).
    tile_budget = max(2 * 1024 * 1024, vmem_limit // 2)

    # Row tile: full R if small, else a multiple of 8 (block-shape rule); when
    # R > Rt, the "parallel" row axis gives the second v7x TensorCore work.
    Rt = R if R <= 512 else 512

    # Spatial tile: largest multiple of 128 fitting the budget (old 2048 cap
    # removed; 32768 only bounds the unrolled lane-group loop).
    if spatial_tile_override is not None:
        Ht = int(spatial_tile_override)
    elif HW <= 128:
        Ht = HW
    else:
        max_ht = tile_budget // (2 * Rt * itemsize)
        hw_ceil = ((HW + 127) // 128) * 128
        Ht = max(128, min((max_ht // 128) * 128, hw_ceil, 32768))
    assert Ht == HW or Ht % 128 == 0, "spatial tile must be lane-aligned"

    Lw = min(Ht, 128)
    n_row = pl.cdiv(R, Rt)
    n_sp = pl.cdiv(HW, Ht)
    needs_mask = (HW % Ht) != 0

    reduce_kernel = _make_reduce_kernel(HW, Ht, Lw, needs_mask, use_mxu_sum)

    scratch_shapes = [pltpu.VMEM((Rt, Lw), x2.dtype)]        # running max
    if not use_mxu_sum:
        scratch_shapes.append(pltpu.VMEM((Rt, Lw), jnp.float32))  # f32 partials

    cost = pl.CostEstimate(
        flops=2 * R * HW,
        transcendentals=0,
        bytes_accessed=R * HW * itemsize + 2 * R * 4)

    row_sum, row_max = pl.pallas_call(
        reduce_kernel,
        out_shape=(jax.ShapeDtypeStruct((R, 1), jnp.float32),
                   jax.ShapeDtypeStruct((R, 1), jnp.float32)),
        grid_spec=pltpu.PrefetchScalarGridSpec(
            num_scalar_prefetch=0,
            grid=(n_row, n_sp),
            in_specs=[pl.BlockSpec((Rt, Ht), lambda r, s: (r, s))],
            out_specs=[pl.BlockSpec((Rt, 1), lambda r, s: (r, 0)),
                       pl.BlockSpec((Rt, 1), lambda r, s: (r, 0))],
            scratch_shapes=scratch_shapes,
        ),
        compiler_params=pltpu.CompilerParams(
            dimension_semantics=("parallel", "arbitrary"),
            vmem_limit_bytes=vmem_limit),
        cost_estimate=cost,
    )(x2)

    sum_bc = row_sum.reshape(B, C)
    max_bc = row_max.reshape(B, C)

    epilogue = _make_epilogue_kernel(1.0 / float(HW))
    out = pl.pallas_call(
        epilogue,
        out_shape=jax.ShapeDtypeStruct((B, C), x_nchw.dtype),
        grid_spec=pltpu.PrefetchScalarGridSpec(
            num_scalar_prefetch=0,
            grid=(1,),
            in_specs=[
                pl.BlockSpec((B, C), lambda i: (0, 0)),   # sum
                pl.BlockSpec((B, C), lambda i: (0, 0)),   # max
                pl.BlockSpec((P, P), lambda i: (0, 0)),   # gram
                pl.BlockSpec((C, P), lambda i: (0, 0)),   # w1 (avg half)^T
                pl.BlockSpec((C, P), lambda i: (0, 0)),   # w1 (max half)^T
                pl.BlockSpec((P, C), lambda i: (0, 0)),   # w2^T
            ],
            out_specs=pl.BlockSpec((B, C), lambda i: (0, 0)),
        ),
        compiler_params=pltpu.CompilerParams(
            dimension_semantics=("arbitrary",)),
    )(sum_bc, max_bc, gram, w1a_t, w1b_t, w2_t)

    return out.reshape(B, C, 1, 1)


# ---------------------------------------------------------------------------
# Pure-JAX reference mirroring the PyTorch forward (verification only).
# ---------------------------------------------------------------------------
def _reference(x_nchw, weights_all, fc1_weight, fc2_weight):
    B, C, H, W = x_nchw.shape
    xf = x_nchw.astype(jnp.float32)
    avg = jnp.mean(xf, axis=(2, 3))                  # (B, C)
    mx = jnp.max(xf, axis=(2, 3))                    # (B, C)
    cat = jnp.concatenate([avg, mx], axis=1)         # (B, 2C)
    w1 = fc1_weight[:, :, 0, 0].astype(jnp.float32)  # (P, 2C)
    y1 = cat @ w1.T                                  # (B, P)
    wall = weights_all.astype(jnp.float32)
    gram = wall.T @ wall                             # (P, P)
    z = jnp.maximum(jnp.einsum("pq,bq->bp", gram, y1), 0.0)
    w2 = fc2_weight[:, :, 0, 0].astype(jnp.float32)  # (C, P)
    out = jax.nn.sigmoid(z @ w2.T)                   # (B, C)
    return out.reshape(B, C, 1, 1).astype(x_nchw.dtype)


if __name__ == "__main__":
    B, C, H, W = 2, 4, 16, 16        # in_planes = 4
    P = NUM_PRIMITIVES               # 10
    K = 8                            # rows of weights_all (number of edges)

    key = jax.random.PRNGKey(0)
    kx, kw, k1, k2 = jax.random.split(key, 4)

    x = jax.random.normal(kx, (B, C, H, W), dtype=jnp.float32)
    weights_all = jax.nn.softmax(
        jax.random.normal(kw, (K, P), dtype=jnp.float32), axis=-1)
    fc1_weight = 0.1 * jax.random.normal(k1, (P, 2 * C, 1, 1), dtype=jnp.float32)
    fc2_weight = 0.1 * jax.random.normal(k2, (C, P, 1, 1), dtype=jnp.float32)

    # Tolerances: the in-kernel matmuls and XLA's reference matmuls may run at
    # different TPU MXU precisions for f32 operands; 2e-3 on post-sigmoid
    # outputs in (0, 1) still validates the whole computation graph.
    TOL = 2e-3

    # 1) f32 activations, single spatial chunk (exact f32 VPU accumulation).
    out = jax.block_until_ready(
        channel_attention(x, weights_all, fc1_weight, fc2_weight))
    ref = _reference(x, weights_all, fc1_weight, fc2_weight)
    assert out.shape == (B, C, 1, 1)
    assert jnp.allclose(out, ref, atol=TOL, rtol=TOL), "f32 mismatch"

    # 2) bf16 activations (exercises the MXU-sum path; native-dtype max).
    xb = x.astype(jnp.bfloat16)
    outb = jax.block_until_ready(
        channel_attention(xb, weights_all, fc1_weight, fc2_weight))
    refb = _reference(xb, weights_all, fc1_weight, fc2_weight)
    assert outb.shape == (B, C, 1, 1)
    assert jnp.allclose(outb.astype(jnp.float32), refb.astype(jnp.float32),
                        atol=1e-2), "bf16 mismatch"

    # 3) Multi-chunk + masked-tail path (forced small spatial tile).
    x3 = jax.random.normal(kx, (B, C, 18, 18), dtype=jnp.float32)  # HW=324
    out3 = jax.block_until_ready(
        channel_attention(x3, weights_all, fc1_weight, fc2_weight,
                          spatial_tile_override=128))
    ref3 = _reference(x3, weights_all, fc1_weight, fc2_weight)
    assert jnp.allclose(out3, ref3, atol=TOL, rtol=TOL), "masked-tail mismatch"

    print("KERNEL_OK")
</pallas_src>

<mosaic_0001>
module attributes {stable_mosaic.version = 11 : i64} {
  func.func @kernel(%arg0: i32, %arg1: i32, %arg2: memref<8x256xf32, #tpu.memory_space<vmem>>, %arg3: memref<8x1xf32, #tpu.memory_space<vmem>>, %arg4: memref<8x1xf32, #tpu.memory_space<vmem>>, %arg5: memref<8x128xf32, #tpu.memory_space<vmem>>, %arg6: memref<8x128xf32, #tpu.memory_space<vmem>>) attributes {dimension_semantics = [#tpu.dimension_semantics<parallel>, #tpu.dimension_semantics<arbitrary>], iteration_bounds = array<i64: 1, 1>, scalar_prefetch = 0 : i64, scratch_operands = 2 : i64, tpu.core_type = #tpu.core_type<tc>, window_params = [{transform_indices = @transform_0, window_bounds = array<i64: 8, 256>}, {transform_indices = @transform_1, window_bounds = array<i64: 8, 1>}, {transform_indices = @transform_2, window_bounds = array<i64: 8, 1>}]} {
    %c0_i32 = arith.constant 0 : i32
    %0 = arith.cmpi eq, %arg1, %c0_i32 : i32
    %1 = arith.extui %0 : i1 to i32
    %c0_i32_0 = arith.constant 0 : i32
    %2 = arith.cmpi ne, %1, %c0_i32_0 : i32
    scf.if %2 {
      %cst = arith.constant 0xFF800000 : f32
      %16 = vector.broadcast %cst : f32 to vector<8x128xf32>
      %c0_13 = arith.constant 0 : index
      %c0_14 = arith.constant 0 : index
      %17 = vector.load %arg5[%c0_13, %c0_14] : memref<8x128xf32, #tpu.memory_space<vmem>>, vector<8x128xf32>
      tpu.vector_store %arg5[%c0_13, %c0_14], %16 {strides = array<i32>} : memref<8x128xf32, #tpu.memory_space<vmem>>, vector<8x128xf32>,
      %cst_15 = arith.constant 0.000000e+00 : f32
      %18 = vector.broadcast %cst_15 : f32 to vector<8x128xf32>
      %c0_16 = arith.constant 0 : index
      %c0_17 = arith.constant 0 : index
      %19 = vector.load %arg6[%c0_16, %c0_17] : memref<8x128xf32, #tpu.memory_space<vmem>>, vector<8x128xf32>
      tpu.vector_store %arg6[%c0_16, %c0_17], %18 {strides = array<i32>} : memref<8x128xf32, #tpu.memory_space<vmem>>, vector<8x128xf32>,
    } else {
    }
    %c0 = arith.constant 0 : index
    %c0_1 = arith.constant 0 : index
    %3 = vector.load %arg5[%c0, %c0_1] : memref<8x128xf32, #tpu.memory_space<vmem>>, vector<8x128xf32>
    %c0_2 = arith.constant 0 : index
    %c0_3 = arith.constant 0 : index
    %4 = vector.load %arg6[%c0_2, %c0_3] : memref<8x128xf32, #tpu.memory_space<vmem>>, vector<8x128xf32>
    %c0_4 = arith.constant 0 : index
    %c0_5 = arith.constant 0 : index
    %5 = vector.load %arg2[%c0_4, %c0_5] : memref<8x256xf32, #tpu.memory_space<vmem>>, vector<8x128xf32>
    %6 = arith.maximumf %3, %5 : vector<8x128xf32>
    %7 = arith.addf %4, %5 : vector<8x128xf32>
    %c0_6 = arith.constant 0 : index
    %c128 = arith.constant 128 : index
    %8 = vector.load %arg2[%c0_6, %c128] : memref<8x256xf32, #tpu.memory_space<vmem>>, vector<8x128xf32>
    %9 = arith.maximumf %6, %8 : vector<8x128xf32>
    %10 = arith.addf %7, %8 : vector<8x128xf32>
    %c0_7 = arith.constant 0 : index
    %c0_8 = arith.constant 0 : index
    %11 = vector.load %arg5[%c0_7, %c0_8] : memref<8x128xf32, #tpu.memory_space<vmem>>, vector<8x128xf32>
    tpu.vector_store %arg5[%c0_7, %c0_8], %9 {strides = array<i32>} : memref<8x128xf32, #tpu.memory_space<vmem>>, vector<8x128xf32>,
    %c0_9 = arith.constant 0 : index
    %c0_10 = arith.constant 0 : index
    %12 = vector.load %arg6[%c0_9, %c0_10] : memref<8x128xf32, #tpu.memory_space<vmem>>, vector<8x128xf32>
    tpu.vector_store %arg6[%c0_9, %c0_10], %10 {strides = array<i32>} : memref<8x128xf32, #tpu.memory_space<vmem>>, vector<8x128xf32>,
    %c0_i32_11 = arith.constant 0 : i32
    %13 = arith.cmpi eq, %arg1, %c0_i32_11 : i32
    %14 = arith.extui %13 : i1 to i32
    %c0_i32_12 = arith.constant 0 : i32
    %15 = arith.cmpi ne, %14, %c0_i32_12 : i32
    scf.if %15 {
      %c0_13 = arith.constant 0 : index
      %c0_14 = arith.constant 0 : index
      %16 = vector.load %arg6[%c0_13, %c0_14] : memref<8x128xf32, #tpu.memory_space<vmem>>, vector<8x128xf32>
      %cst = arith.constant dense<0.000000e+00> : vector<8xf32>
      %17 = vector.multi_reduction <add>, %16, %cst [1] : vector<8x128xf32> to vector<8xf32>
      %18 = vector.shape_cast %17 : vector<8xf32> to vector<8x1xf32>
      %c0_15 = arith.constant 0 : index
      %c0_16 = arith.constant 0 : index
      %19 = vector.load %arg3[%c0_15, %c0_16] : memref<8x1xf32, #tpu.memory_space<vmem>>, vector<8x1xf32>
      tpu.vector_store %arg3[%c0_15, %c0_16], %18 {strides = array<i32>} : memref<8x1xf32, #tpu.memory_space<vmem>>, vector<8x1xf32>,
      %c0_17 = arith.constant 0 : index
      %c0_18 = arith.constant 0 : index
      %20 = vector.load %arg5[%c0_17, %c0_18] : memref<8x128xf32, #tpu.memory_space<vmem>>, vector<8x128xf32>
      %cst_19 = arith.constant dense<0xFF800000> : vector<8xf32>
      %21 = vector.multi_reduction <maximumf>, %20, %cst_19 [1] : vector<8x128xf32> to vector<8xf32>
      %22 = vector.shape_cast %21 : vector<8xf32> to vector<8x1xf32>
      %c0_20 = arith.constant 0 : index
      %c0_21 = arith.constant 0 : index
      %23 = vector.load %arg4[%c0_20, %c0_21] : memref<8x1xf32, #tpu.memory_space<vmem>>, vector<8x1xf32>
      tpu.vector_store %arg4[%c0_20, %c0_21], %22 {strides = array<i32>} : memref<8x1xf32, #tpu.memory_space<vmem>>, vector<8x1xf32>,
    } else {
    }
    return
  }
  func.func @transform_0(%arg0: i32, %arg1: i32) -> (i32, i32) {
    %c0_i32 = arith.constant 0 : i32
    return %arg0, %arg1 : i32, i32
  }
  func.func @transform_1(%arg0: i32, %arg1: i32) -> (i32, i32) {
    %c0_i32 = arith.constant 0 : i32
    %c0_i32_0 = arith.constant 0 : i32
    return %arg0, %c0_i32 : i32, i32
  }
  func.func @transform_2(%arg0: i32, %arg1: i32) -> (i32, i32) {
    %c0_i32 = arith.constant 0 : i32
    %c0_i32_0 = arith.constant 0 : i32
    return %arg0, %c0_i32 : i32, i32
  }
}

</mosaic_0001>

<llo_original>
// kernel: tpu_custom_call.1
$region0: #{tpu_custom_call.1}
  #allocation0 [shape = 'u32[]', space=smem, size = 0x4, offset = 0x4, fixed_abs, tag = 'smem constant byte address 0x4 - core index']
  #allocation1 [shape = 'u32[144,128]{1,0:T(1,128)}', space=vmem, size = 0x12000, scoped, tag = 'internal scratch']
  #allocation2 [shape = 'f32[8,128]{1,0:T(8,128)}', space=vmem, size = 0x1000, scoped, tag = 'scratch operand']
  #allocation3 [shape = 'f32[8,128]{1,0:T(8,128)}', space=vmem, size = 0x1000, scoped, tag = 'scratch operand']
  %s0 = inlined_call_operand.hbm [shape: f32[8,256], index: 0, kind: input, shape index: {}]
  %s1 = inlined_call_operand.vmem [shape: f32[8,1], index: 1, kind: output, shape index: {0}]
  %s2 = inlined_call_operand.vmem [shape: f32[8,1], index: 2, kind: output, shape index: {1}]
  %3 = xla_tuple %s1, %s2
  %s4 = sld [smem:[#allocation0]]
  $region34: #{tpu_custom_call.1} parent=0
    _
  %s6 = ssub.s32 1, %s4
  %s7 = scalar_select 0, %s6, %s4
  $region1: #{tpu_custom_call.1} parent=0
    #allocation4 [shape = 'u8[8192]{0}', space=vmem, size = 0x2000, scoped, tag = 'input window, operand 0, single buffered']
    #allocation5 [shape = 's32[1]{0}', space=sflag, size = 0x4, scoped, tag = 'scoped memory for tpu_custom_call.1']
    %8 = vsyncpa [#allocation5], 0
    // Predicated region
    $region2: #{tpu_custom_call.1} parent=1 // pred_check
      _
    $region3: #{tpu_custom_call.1} parent=1 // pred_check_branch
      %10 = sbr.rel (0) target = $region5
    $region4: #{tpu_custom_call.1} parent=1 // pred_region
      %s12 = ssub.s32 256, 256
      %13 = vsyncadd [#allocation5], %s12
      %s15 = sshll.u32 [#allocation4], 4
      %s16 = int_to_ptr.vmem [resolvable:$true] %s15
      %18 = dma.hbm_to_vmem [thread:$0]  %s0, 256, %s16, [#allocation5]
    $region5: #{tpu_custom_call.1} parent=1 // pred_fallthru
      _
    // Predicated region
    $region6: #{tpu_custom_call.1} parent=1 // pred_check
      _
    $region7: #{tpu_custom_call.1} parent=1 // pred_check_branch
      %20 = sbr.rel (0) target = $region9
    $region8: #{tpu_custom_call.1} parent=1 // pred_region
      %21 = dma.done [#allocation5], 256
    $region9: #{tpu_custom_call.1} parent=1 // pred_fallthru
      _
    %p22 = scmp.eq.s32.totalorder 0, 0
    // Predicated region
    $region10: #{tpu_custom_call.1} parent=1 // pred_check
      %p23 = pneg %p22
    $region11: #{tpu_custom_call.1} parent=1 // pred_check_branch
      %25 = sbr.rel (%p23) target = $region13
    $region12: #{tpu_custom_call.1} parent=1 // pred_region
      %26 = vst [vmem:[#allocation2] sm:$0xff] -inf
      %27 = vst [vmem:[#allocation3] sm:$0xff] 0.0
    $region13: #{tpu_custom_call.1} parent=1 // pred_fallthru
      _
    %v28 = vld [vmem:[#allocation2] sm:$0xff]
    %v29 = vld [vmem:[#allocation3] sm:$0xff]
    %v30 = vld [vmem:[#allocation4] sm:$0xff]
    %v31 = vmax.f32 %v28, %v30
    %v32 = vadd.f32 %v29, %v30
    %v33 = vld [vmem:[#allocation4 + $0x8] sm:$0xff]
    %v34 = vmax.f32 %v31, %v33
    %v35 = vadd.f32 %v32, %v33
    %36 = vst [vmem:[#allocation2] sm:$0xff] %v34
    %37 = vst [vmem:[#allocation3] sm:$0xff] %v35
    // Predicated region
    $region14: #{tpu_custom_call.1} parent=1 // pred_check
      %p38 = pneg %p22
    $region15: #{tpu_custom_call.1} parent=1 // pred_check_branch
      %40 = sbr.rel (%p38) target = $region17
    $region16: #{tpu_custom_call.1} parent=1 // pred_region
      %v41 = vld [vmem:[#allocation3] sm:$0xff]
      %42 = vadd.xlane.f32.xlu0 %v41
      %v43 = vpop.xlane.xlu0 %42
      %vm44 = vcmask 7168
      %45 = vst.msk [vmem:[%s1] sm:$0xff] %vm44, %v43
      %v46 = vld [vmem:[#allocation2] sm:$0xff]
      %47 = vmax.xlane.f32.xlu0 %v46
      %v48 = vpop.xlane.xlu0 %47
      %49 = vst.msk [vmem:[%s2] sm:$0xff] %vm44, %v48
    $region17: #{tpu_custom_call.1} parent=1 // pred_fallthru
      _
    // Predicated region
    $region18: #{tpu_custom_call.1} parent=1 // pred_check
      _
    $region19: #{tpu_custom_call.1} parent=1 // pred_check_branch
      %51 = sbr.rel (0) target = $region21
    $region20: #{tpu_custom_call.1} parent=1 // pred_region
      _
    $region21: #{tpu_custom_call.1} parent=1 // pred_fallthru
      _
    // Predicated region
    $region22: #{tpu_custom_call.1} parent=1 // pred_check
      _
    $region23: #{tpu_custom_call.1} parent=1 // pred_check_branch
      %53 = sbr.rel (0) target = $region25
    $region24: #{tpu_custom_call.1} parent=1 // pred_region
      _
    $region25: #{tpu_custom_call.1} parent=1 // pred_fallthru
      _
    // Predicated region
    $region26: #{tpu_custom_call.1} parent=1 // pred_check
      _
    $region27: #{tpu_custom_call.1} parent=1 // pred_check_branch
      %55 = sbr.rel (0) target = $region29
    $region28: #{tpu_custom_call.1} parent=1 // pred_region
      _
    $region29: #{tpu_custom_call.1} parent=1 // pred_fallthru
      _
    // Predicated region
    $region30: #{tpu_custom_call.1} parent=1 // pred_check
      _
    $region31: #{tpu_custom_call.1} parent=1 // pred_check_branch
      %57 = sbr.rel (0) target = $region33
    $region32: #{tpu_custom_call.1} parent=1 // pred_region
      _
    $region33: #{tpu_custom_call.1} parent=1 // pred_fallthru
      _
    %58 = vsyncpa [#allocation5], 1

</llo_original>
